<compile_context>
chip_gen: v7x
topology: tpu7x:2x2x1
jax: 0.10.0
libtpu: 0.0.40
codegen_flags: <defaults>
</compile_context>

<pallas_src>
import functools
import numpy as np
import jax
import jax.numpy as jnp
from jax.experimental import pallas as pl
from jax.experimental.pallas import tpu as pltpu


# ----------------------------------------------------------------------------- glue
def unfold3x3(x_nchw):
    """torch.nn.Unfold(kernel_size=3, dilation=1, padding=1, stride=1) on NCHW input.
    (B, C, H, W) -> (B, C*9, H*W), feature index = c*9 + ki*3 + kj."""
    B, C, H, W = x_nchw.shape
    xp = jnp.pad(x_nchw, ((0, 0), (0, 0), (1, 1), (1, 1)))
    pats = [xp[:, :, ki:ki + H, kj:kj + W] for ki in range(3) for kj in range(3)]
    p = jnp.stack(pats, axis=2)  # (B, C, 9, H, W)
    return p.reshape(B, C * 9, H * W)


# ----------------------------------------------------------------------------- kernels
def _corr_softmax_kernel(q_ref, v_ref, p_ref, *, scale, t, hw):
    # q_ref: (1, Lq, d9) bf16   v_ref: (1, t*hw, d9) bf16   p_ref: (1, Lq, t*hw) f32
    q = q_ref[0]
    v = v_ref[0]
    # one fat bf16 MXU matmul over all t frames, f32 accumulation
    corr = jax.lax.dot_general(q, v, (((1,), (1,)), ((), ())),
                               preferred_element_type=jnp.float32)
    corr = corr * scale                      # single fused (10/dim) scale
    segs = []
    for ti in range(t):                      # per-frame softmax over hw (static, t is small)
        seg = corr[:, ti * hw:(ti + 1) * hw]
        m = jnp.max(seg, axis=-1, keepdims=True)
        e = jnp.exp(seg - m)
        s = jnp.sum(e, axis=-1, keepdims=True)
        segs.append(e * pl.reciprocal(s, approx=True))
    p_ref[0] = jnp.concatenate(segs, axis=-1)   # single lane-dense (Lq, t*hw) store


def _agg_proj_kernel(a_ref, v_ref, wt_ref, b_ref, o_ref, *, n_heads, d_head):
    # a_ref : (1, M, TQ, Len_in) bf16     v_ref : (1, Len_in, d_model) bf16
    # wt_ref: (d_model, d_model) bf16 (already transposed: y = x @ wt + b)
    # b_ref : (1, d_model) f32            o_ref : (1, TQ, d_model) f32
    v = v_ref[0]
    wt = wt_ref[...]
    acc = None
    for m in range(n_heads):
        v_m = v[:, m * d_head:(m + 1) * d_head]              # (Len_in, D) bf16
        w_m = wt[m * d_head:(m + 1) * d_head, :]             # (D, d_model) bf16
        # tiny projection first so the big matmul accumulates into full d_model lanes
        c_m = jnp.dot(v_m, w_m,
                      preferred_element_type=jnp.float32).astype(jnp.bfloat16)
        contrib = jnp.dot(a_ref[0, m], c_m,
                          preferred_element_type=jnp.float32)  # (TQ, d_model) f32
        acc = contrib if acc is None else acc + contrib
    o_ref[0] = acc + b_ref[...]


# ----------------------------------------------------------------------------- module
class MSDeformMatchV5AttnPallas:
    def __init__(self, d_model=32, n_levels=2, n_heads=2, n_points=2, key=None):
        if d_model % n_heads != 0:
            raise ValueError("d_model must be divisible by n_heads")
        self.d_model, self.n_levels = d_model, n_levels
        self.n_heads, self.n_points = n_heads, n_points
        # output_proj: xavier_uniform_ weight, zero bias (deterministic in-script init)
        bound = float(np.sqrt(6.0 / (d_model + d_model)))
        key = jax.random.PRNGKey(42) if key is None else key
        self.proj_w = jax.random.uniform(key, (d_model, d_model), jnp.float32,
                                         -bound, bound)          # (out, in)
        self.proj_b = jnp.zeros((d_model,), jnp.float32)
        # softmax of ones over n_levels*n_points*9  ->  uniform weights
        self.attn_const = 1.0 / (n_levels * n_points * 9)

    def __call__(self, query, reference_points, input_flatten,
                 input_spatial_shapes, input_level_start_index):
        N, Len_q, dim = query.shape
        _, Len_in, _ = input_flatten.shape
        ss = np.asarray(input_spatial_shapes)
        h = w = int(ss[0, 0])
        t = Len_in // (h * w)
        assert int((ss[:, 0] * ss[:, 1]).sum()) == Len_in
        assert Len_q == t * h * w
        M, L, P = self.n_heads, self.n_levels, self.n_points
        D = dim // M
        P9 = P * 9
        hw = h * w
        d9 = dim * 9

        # ---------------- 3x3 unfold patches (glue, NCHW im2col) ----------------
        query_p = query.reshape(N, t, h, w, dim).transpose(0, 1, 4, 2, 3).reshape(N * t, dim, h, w)
        q_patch = unfold3x3(query_p).reshape(N, t, d9, hw).transpose(0, 1, 3, 2).reshape(N, t * hw, d9)
        inp_p = input_flatten.reshape(N, t, h, w, dim).transpose(0, 1, 4, 2, 3).reshape(N * t, dim, h, w)
        v_patch = unfold3x3(inp_p).reshape(N, t, d9, hw).transpose(0, 1, 3, 2).reshape(N, t * hw, d9)

        # ---------------- Pallas kernel 1: correlation matmul + per-frame softmax ------
        prob_flat = pl.pallas_call(
            functools.partial(_corr_softmax_kernel, scale=10.0 / dim, t=t, hw=hw),
            out_shape=jax.ShapeDtypeStruct((N, Len_q, t * hw), jnp.float32),
            grid=(N,),
            in_specs=[pl.BlockSpec((1, Len_q, d9), lambda n: (n, 0, 0)),
                      pl.BlockSpec((1, t * hw, d9), lambda n: (n, 0, 0))],
            out_specs=pl.BlockSpec((1, Len_q, t * hw), lambda n: (n, 0, 0)),
            compiler_params=pltpu.CompilerParams(
                dimension_semantics=("parallel",)),
        )(q_patch.astype(jnp.bfloat16), v_patch.astype(jnp.bfloat16))
        prob = prob_flat.reshape(N, Len_q, t, hw)       # free reshape, no transpose needed

        # ---------------- top-k + 3x3 neighbourhood expansion (glue) ----------------
        # TODO(synk): top-k has no clean in-kernel Pallas equivalent; done with lax.top_k.
        _, idx = jax.lax.top_k(prob, P)                         # (N, Len_q, t, P)
        shifts = jnp.array([-1 - h, -h, 1 - h, -1, 0, 1, -1 + h, h, 1 + h], dtype=idx.dtype)
        res = idx[..., None, :] + shifts[:, None]               # (N, Len_q, t, 9, P)
        res = res.reshape(N, Len_q, t, P9)
        max_grid = (h - 1) * (w - 1)                            # matches the PyTorch reference
        res = jnp.clip(res, 0, max_grid)

        res_f = res.astype(jnp.float32)
        offsets_w = jnp.floor(res_f / h)                        # h-stride, as in the reference
        offsets_h = res_f - offsets_w * h
        offsets = jnp.stack([offsets_w, offsets_h], axis=-1)    # (N, Len_q, t, P9, 2)
        sampling_offsets = offsets.reshape(N, Len_q, M, L, P9, 2)

        assert reference_points.shape[-1] == 2
        offset_normalizer = np.stack([ss[:, 1], ss[:, 0]], -1).astype(np.float32)  # (L, 2)
        sampling_locations = sampling_offsets / offset_normalizer[None, None, None, :, None, :]

        # ---------------- MSDeformAttnFunction as a dense weight matrix (glue) ---------
        # grid_sample(bilinear, zeros padding, align_corners=False) per level/head/point is
        # expressed as A[n, m, q, s]; output = A @ value_head is done in Pallas.  A is built
        # with a scatter-add (no one-hot intermediate).
        Hl = ss[:, 0].astype(np.float32)
        Wl = ss[:, 1].astype(np.float32)
        lvl_start = np.concatenate([[0], np.cumsum(ss[:, 0] * ss[:, 1])[:-1]]).astype(np.int32)
        Wb = Wl.reshape(1, 1, 1, L, 1)
        Hb = Hl.reshape(1, 1, 1, L, 1)
        Wi = Wb.astype(np.int32)
        Hi = Hb.astype(np.int32)
        startb = lvl_start.reshape(1, 1, 1, L, 1)

        ix = sampling_locations[..., 0] * Wb - 0.5
        iy = sampling_locations[..., 1] * Hb - 0.5
        x0 = jnp.floor(ix)
        y0 = jnp.floor(iy)
        lx = ix - x0
        ly = iy - y0
        x0i = x0.astype(jnp.int32)
        y0i = y0.astype(jnp.int32)

        idx_list, w_list = [], []
        for dy, dx in ((0, 0), (0, 1), (1, 0), (1, 1)):
            xc = x0i + dx
            yc = y0i + dy
            wx = lx if dx == 1 else (1.0 - lx)
            wy = ly if dy == 1 else (1.0 - ly)
            valid = ((xc >= 0) & (xc < Wi) & (yc >= 0) & (yc < Hi)).astype(jnp.float32)
            # out-of-range corners get weight 0; clip index so the scatter stays in bounds
            flat = jnp.clip(startb + yc * Wi + xc, 0, Len_in - 1)
            idx_list.append(flat)
            w_list.append(self.attn_const * wx * wy * valid)
        S4 = L * P9 * 4
        flat_all = jnp.stack(idx_list, axis=-1).reshape(N, Len_q, M, S4)
        w_all = jnp.stack(w_list, axis=-1).reshape(N, Len_q, M, S4)

        n_ix = jnp.arange(N)[:, None, None, None]
        q_ix = jnp.arange(Len_q)[None, :, None, None]
        m_ix = jnp.arange(M)[None, None, :, None]
        A = jnp.zeros((N, M, Len_q, Len_in), jnp.float32)
        A = A.at[n_ix, m_ix, q_ix, flat_all].add(w_all)         # (N, M, Len_q, Len_in)

        # ---------------- Pallas kernel 2: aggregation matmuls + output projection -----
        tq = Len_q
        for cand in (128, 64, 32, 16, 8):
            if Len_q % cand == 0 and Len_q // cand >= 2:
                tq = cand
                break
        nq = Len_q // tq

        out = pl.pallas_call(
            functools.partial(_agg_proj_kernel, n_heads=M, d_head=D),
            out_shape=jax.ShapeDtypeStruct((N, Len_q, dim), jnp.float32),
            grid=(N, nq),
            in_specs=[pl.BlockSpec((1, M, tq, Len_in), lambda n, qi: (n, 0, qi, 0)),
                      pl.BlockSpec((1, Len_in, dim), lambda n, qi: (n, 0, 0)),
                      pl.BlockSpec((dim, dim), lambda n, qi: (0, 0)),
                      pl.BlockSpec((1, dim), lambda n, qi: (0, 0))],
            out_specs=pl.BlockSpec((1, tq, dim), lambda n, qi: (n, qi, 0)),
            compiler_params=pltpu.CompilerParams(
                dimension_semantics=("parallel", "parallel")),
        )(A.astype(jnp.bfloat16),
          input_flatten.astype(jnp.bfloat16),           # lane-dense value, heads sliced in-kernel
          self.proj_w.T.astype(jnp.bfloat16),
          self.proj_b.reshape(1, dim))

        return out, sampling_locations


# ----------------------------------------------------------------------------- main
if __name__ == "__main__":
    N = 2
    d_model = 32
    n_heads = 2
    n_levels = 2
    n_points = 2
    h = w = 4
    t = n_heads * n_levels                      # query.view(N, t, h, w, dim) / offsets view constraint
    Len_in = Len_q = t * h * w                  # 64

    key = jax.random.PRNGKey(0)
    kq, kv, kr, kw = jax.random.split(key, 4)
    query = jax.random.normal(kq, (N, Len_q, d_model), jnp.float32)
    input_flatten = jax.random.normal(kv, (N, Len_in, d_model), jnp.float32)
    reference_points = jax.random.uniform(kr, (N, Len_q, n_levels, 2), jnp.float32)
    # n_levels rows, sum(H_l*W_l) == Len_in and spatial_shapes[0,0] == h
    input_spatial_shapes = np.array([[h, h * n_heads]] * n_levels, dtype=np.int32)
    input_level_start_index = np.array([0, h * h * n_heads], dtype=np.int32)

    module = MSDeformMatchV5AttnPallas(d_model, n_levels, n_heads, n_points, key=kw)
    output, sampling_locations = module(query, reference_points, input_flatten,
                                        input_spatial_shapes, input_level_start_index)
    jax.block_until_ready((output, sampling_locations))
    assert output.shape == (N, Len_q, d_model)
    assert sampling_locations.shape == (N, Len_q, n_heads, n_levels, n_points * 9, 2)
    assert bool(jnp.all(jnp.isfinite(output)))
    print("KERNEL_OK")
</pallas_src>

<mosaic_0001>
module attributes {stable_mosaic.version = 11 : i64} {
  func.func @_corr_softmax_kernel(%arg0: i32, %arg1: memref<1x64x288xbf16, #tpu.memory_space<vmem>>, %arg2: memref<1x64x288xbf16, #tpu.memory_space<vmem>>, %arg3: memref<1x64x64xf32, #tpu.memory_space<vmem>>) attributes {dimension_semantics = [#tpu.dimension_semantics<parallel>], iteration_bounds = array<i64: 2>, scalar_prefetch = 0 : i64, scratch_operands = 0 : i64, tpu.core_type = #tpu.core_type<tc>, window_params = [{transform_indices = @transform_0, window_bounds = array<i64: 1, 64, 288>}, {transform_indices = @transform_1, window_bounds = array<i64: 1, 64, 288>}, {transform_indices = @transform_2, window_bounds = array<i64: 1, 64, 64>}]} {
    %c0 = arith.constant 0 : index
    %c0_0 = arith.constant 0 : index
    %c0_1 = arith.constant 0 : index
    %0 = vector.load %arg1[%c0, %c0_0, %c0_1] : memref<1x64x288xbf16, #tpu.memory_space<vmem>>, vector<1x64x288xbf16>
    %1 = vector.shape_cast %0 : vector<1x64x288xbf16> to vector<64x288xbf16>
    %c0_2 = arith.constant 0 : index
    %c0_3 = arith.constant 0 : index
    %c0_4 = arith.constant 0 : index
    %2 = vector.load %arg2[%c0_2, %c0_3, %c0_4] : memref<1x64x288xbf16, #tpu.memory_space<vmem>>, vector<1x64x288xbf16>
    %3 = vector.shape_cast %2 : vector<1x64x288xbf16> to vector<64x288xbf16>
    %cst = arith.constant dense<0.000000e+00> : vector<64x64xf32>
    %4 = tpu.matmul %1, %3, %cst {dimension_numbers = #tpu.dot_dimension_numbers<[1], [1], [0], [0], [0, 0, 1, 0], [], []>} : vector<64x288xbf16>, vector<64x288xbf16>, vector<64x64xf32> -> vector<64x64xf32>
    %cst_5 = arith.constant 3.125000e-01 : f32
    %5 = vector.broadcast %cst_5 : f32 to vector<64x64xf32>
    %6 = arith.mulf %4, %5 : vector<64x64xf32>
    %7 = vector.extract_strided_slice %6 {offsets = [0, 0], sizes = [64, 16], strides = [1, 1]} : vector<64x64xf32> to vector<64x16xf32>
    %cst_6 = arith.constant dense<0xFF800000> : vector<64xf32>
    %8 = vector.multi_reduction <maximumf>, %7, %cst_6 [1] : vector<64x16xf32> to vector<64xf32>
    %9 = vector.shape_cast %8 : vector<64xf32> to vector<64x1xf32>
    %10 = vector.broadcast %9 : vector<64x1xf32> to vector<64x16xf32>
    %11 = arith.subf %7, %10 : vector<64x16xf32>
    %12 = math.exp %11 : vector<64x16xf32>
    %cst_7 = arith.constant dense<0.000000e+00> : vector<64xf32>
    %13 = vector.multi_reduction <add>, %12, %cst_7 [1] : vector<64x16xf32> to vector<64xf32>
    %14 = vector.shape_cast %13 : vector<64xf32> to vector<64x1xf32>
    %15 = tpu.reciprocal %14 {approx = true} : vector<64x1xf32> -> vector<64x1xf32>
    %16 = vector.broadcast %15 : vector<64x1xf32> to vector<64x16xf32>
    %17 = arith.mulf %12, %16 : vector<64x16xf32>
    %18 = vector.extract_strided_slice %6 {offsets = [0, 16], sizes = [64, 16], strides = [1, 1]} : vector<64x64xf32> to vector<64x16xf32>
    %cst_8 = arith.constant dense<0xFF800000> : vector<64xf32>
    %19 = vector.multi_reduction <maximumf>, %18, %cst_8 [1] : vector<64x16xf32> to vector<64xf32>
    %20 = vector.shape_cast %19 : vector<64xf32> to vector<64x1xf32>
    %21 = vector.broadcast %20 : vector<64x1xf32> to vector<64x16xf32>
    %22 = arith.subf %18, %21 : vector<64x16xf32>
    %23 = math.exp %22 : vector<64x16xf32>
    %cst_9 = arith.constant dense<0.000000e+00> : vector<64xf32>
    %24 = vector.multi_reduction <add>, %23, %cst_9 [1] : vector<64x16xf32> to vector<64xf32>
    %25 = vector.shape_cast %24 : vector<64xf32> to vector<64x1xf32>
    %26 = tpu.reciprocal %25 {approx = true} : vector<64x1xf32> -> vector<64x1xf32>
    %27 = vector.broadcast %26 : vector<64x1xf32> to vector<64x16xf32>
    %28 = arith.mulf %23, %27 : vector<64x16xf32>
    %29 = vector.extract_strided_slice %6 {offsets = [0, 32], sizes = [64, 16], strides = [1, 1]} : vector<64x64xf32> to vector<64x16xf32>
    %cst_10 = arith.constant dense<0xFF800000> : vector<64xf32>
    %30 = vector.multi_reduction <maximumf>, %29, %cst_10 [1] : vector<64x16xf32> to vector<64xf32>
    %31 = vector.shape_cast %30 : vector<64xf32> to vector<64x1xf32>
    %32 = vector.broadcast %31 : vector<64x1xf32> to vector<64x16xf32>
    %33 = arith.subf %29, %32 : vector<64x16xf32>
    %34 = math.exp %33 : vector<64x16xf32>
    %cst_11 = arith.constant dense<0.000000e+00> : vector<64xf32>
    %35 = vector.multi_reduction <add>, %34, %cst_11 [1] : vector<64x16xf32> to vector<64xf32>
    %36 = vector.shape_cast %35 : vector<64xf32> to vector<64x1xf32>
    %37 = tpu.reciprocal %36 {approx = true} : vector<64x1xf32> -> vector<64x1xf32>
    %38 = vector.broadcast %37 : vector<64x1xf32> to vector<64x16xf32>
    %39 = arith.mulf %34, %38 : vector<64x16xf32>
    %40 = vector.extract_strided_slice %6 {offsets = [0, 48], sizes = [64, 16], strides = [1, 1]} : vector<64x64xf32> to vector<64x16xf32>
    %cst_12 = arith.constant dense<0xFF800000> : vector<64xf32>
    %41 = vector.multi_reduction <maximumf>, %40, %cst_12 [1] : vector<64x16xf32> to vector<64xf32>
    %42 = vector.shape_cast %41 : vector<64xf32> to vector<64x1xf32>
    %43 = vector.broadcast %42 : vector<64x1xf32> to vector<64x16xf32>
    %44 = arith.subf %40, %43 : vector<64x16xf32>
    %45 = math.exp %44 : vector<64x16xf32>
    %cst_13 = arith.constant dense<0.000000e+00> : vector<64xf32>
    %46 = vector.multi_reduction <add>, %45, %cst_13 [1] : vector<64x16xf32> to vector<64xf32>
    %47 = vector.shape_cast %46 : vector<64xf32> to vector<64x1xf32>
    %48 = tpu.reciprocal %47 {approx = true} : vector<64x1xf32> -> vector<64x1xf32>
    %49 = vector.broadcast %48 : vector<64x1xf32> to vector<64x16xf32>
    %50 = arith.mulf %45, %49 : vector<64x16xf32>
    %51 = tpu.concatenate %17, %28, %39, %50 in 1 : vector<64x16xf32>, vector<64x16xf32>, vector<64x16xf32>, vector<64x16xf32> -> vector<64x64xf32>
    %c0_14 = arith.constant 0 : index
    %c0_15 = arith.constant 0 : index
    %c0_16 = arith.constant 0 : index
    %52 = vector.load %arg3[%c0_14, %c0_15, %c0_16] : memref<1x64x64xf32, #tpu.memory_space<vmem>>, vector<1x64x64xf32>
    %53 = vector.shape_cast %52 : vector<1x64x64xf32> to vector<64x64xf32>
    %54 = vector.shape_cast %51 : vector<64x64xf32> to vector<1x64x64xf32>
    tpu.vector_store %arg3[%c0_14, %c0_15, %c0_16], %54 {strides = array<i32>} : memref<1x64x64xf32, #tpu.memory_space<vmem>>, vector<1x64x64xf32>,
    return
  }
  func.func @transform_0(%arg0: i32) -> (i32, i32, i32) {
    %c0_i32 = arith.constant 0 : i32
    %c0_i32_0 = arith.constant 0 : i32
    %c0_i32_1 = arith.constant 0 : i32
    return %arg0, %c0_i32, %c0_i32_0 : i32, i32, i32
  }
  func.func @transform_1(%arg0: i32) -> (i32, i32, i32) {
    %c0_i32 = arith.constant 0 : i32
    %c0_i32_0 = arith.constant 0 : i32
    %c0_i32_1 = arith.constant 0 : i32
    return %arg0, %c0_i32, %c0_i32_0 : i32, i32, i32
  }
  func.func @transform_2(%arg0: i32) -> (i32, i32, i32) {
    %c0_i32 = arith.constant 0 : i32
    %c0_i32_0 = arith.constant 0 : i32
    %c0_i32_1 = arith.constant 0 : i32
    return %arg0, %c0_i32, %c0_i32_0 : i32, i32, i32
  }
}

</mosaic_0001>

<llo_original>
// kernel: tpu_custom_call.1
$region0: #{tpu_custom_call.1}
  #allocation0 [shape = 'u32[]', space=smem, size = 0x4, offset = 0x4, fixed_abs, tag = 'smem constant byte address 0x4 - core index']
  #allocation1 [shape = 'u32[144,128]{1,0:T(1,128)}', space=vmem, size = 0x12000, scoped, tag = 'internal scratch']
  %s0 = inlined_call_operand.hbm [shape: bf16[2,64,288], index: 0, kind: input, shape index: {}]
  %s1 = inlined_call_operand.hbm [shape: bf16[2,64,288], index: 1, kind: input, shape index: {}]
  %s2 = inlined_call_operand.hbm [shape: f32[2,64,64], index: 2, kind: output, shape index: {}]
  %s3 = sld [smem:[#allocation0]]
  $region49: #{tpu_custom_call.1} parent=0
    _
  %s5 = ssub.s32 1, %s3
  %s6 = scalar_select 0, %s5, %s3
  $region1: #{tpu_custom_call.1} parent=0
    #allocation2 [shape = 'u8[98304]{0}', space=vmem, size = 0x18000, scoped, tag = 'input window, operand 0']
    #allocation3 [shape = 's32[2]{0}', space=sflag, size = 0x8, scoped, tag = 'scoped memory for tpu_custom_call.1']
    #allocation4 [shape = 's32[2]{0}', space=sflag, size = 0x8, scoped, tag = 'scoped memory for tpu_custom_call.1']
    #allocation5 [shape = 'u8[98304]{0}', space=vmem, size = 0x18000, scoped, tag = 'input window, operand 1']
    #allocation6 [shape = 's32[2]{0}', space=sflag, size = 0x8, scoped, tag = 'scoped memory for tpu_custom_call.1']
    #allocation7 [shape = 'u8[65536]{0}', space=vmem, size = 0x10000, scoped, tag = 'output window, operand 0']
    %7 = vsyncpa [#allocation3], 0
    %s8 = scalar_lea.sflag [#allocation3], 1
    %9 = vsyncpa %s8, 0
    %10 = vsyncpa [#allocation6], 0
    %s11 = scalar_lea.sflag [#allocation6], 1
    %12 = vsyncpa %s11, 0
    %13 = vsyncpa [#allocation4], 0
    %s14 = scalar_lea.sflag [#allocation4], 1
    %15 = vsyncpa %s14, 0
    loop: start=0, step=1, limit=4
    $region2: #{tpu_custom_call.1} parent=1 // loop_pre_header
      _
    $region3: #{tpu_custom_call.1} parent=1 // loop_header
      %s17 = sphi 0, %s21
      %p18 = scmp.ge.s32.totalorder %s17, 4
      %s27 = sphi 0, %s29
      %s30 = sphi 0, %s27
      %s31 = sphi 0, %s30
      %s47 = sphi 0, %s31
      %s53 = sphi 0, %s55
      %s56 = sphi 0, %s53
      %s57 = sphi 0, %s56
      %s73 = sphi 0, %s57
      %s79 = sphi 0, %s81
      %s82 = sphi 0, %s79
      %s83 = sphi 0, %s82
      %s99 = sphi 0, %s83
    $region4: #{tpu_custom_call.1} parent=1 // loop_header_branch
      %20 = sbr.rel (%p18) target = $region8
    $region5: #{tpu_custom_call.1} parent=1 // loop_body
      %s22 = ssub.s32 %s17, 1
      %s23 = ssub.s32 %s17, 2
      %s24 = sadd.s32 %s17, 1
      %s25 = ssub.s32 %s17, %s24
      %p26 = scmp.eq.s32.totalorder %s25, 0
      %s28 = sadd.s32 %s27, 1
      %s29 = scalar_select %p26, %s27, %s28
      %p32 = pneg %p26
      %p33 = scmp.eq.s32.totalorder %s17, 1
      %p34 = por %p32, %p33
      %p35 = scmp.ne.s32.totalorder %s27, %s30
      %p36 = scmp.eq.s32.totalorder %s17, 0
      %p37 = por %p35, %p36
      %p38 = scmp.ne.s32.totalorder %s27, %s30
      %p39 = scmp.eq.s32.totalorder %s22, 1
      %p40 = por %p38, %p39
      %p41 = scmp.ne.s32.totalorder %s30, %s31
      %p42 = scmp.eq.s32.totalorder %s22, 0
      %p43 = por %p41, %p42
      %p44 = scmp.ne.s32.totalorder %s30, %s31
      %p45 = scmp.eq.s32.totalorder %s23, 1
      %p46 = por %p44, %p45
      %p48 = scmp.ne.s32.totalorder %s31, %s47
      %p49 = scmp.eq.s32.totalorder %s23, 0
      %p50 = por %p48, %p49
      %s51 = ssub.s32 %s17, %s24
      %p52 = scmp.eq.s32.totalorder %s51, 0
      %s54 = sadd.s32 %s53, 1
      %s55 = scalar_select %p52, %s53, %s54
      %p58 = pneg %p52
      %p59 = scmp.eq.s32.totalorder %s17, 1
      %p60 = por %p58, %p59
      %p61 = scmp.ne.s32.totalorder %s53, %s56
      %p62 = scmp.eq.s32.totalorder %s17, 0
      %p63 = por %p61, %p62
      %p64 = scmp.ne.s32.totalorder %s53, %s56
      %p65 = scmp.eq.s32.totalorder %s22, 1
      %p66 = por %p64, %p65
      %p67 = scmp.ne.s32.totalorder %s56, %s57
      %p68 = scmp.eq.s32.totalorder %s22, 0
      %p69 = por %p67, %p68
      %p70 = scmp.ne.s32.totalorder %s56, %s57
      %p71 = scmp.eq.s32.totalorder %s23, 1
      %p72 = por %p70, %p71
      %p74 = scmp.ne.s32.totalorder %s57, %s73
      %p75 = scmp.eq.s32.totalorder %s23, 0
      %p76 = por %p74, %p75
      %s77 = ssub.s32 %s17, %s24
      %p78 = scmp.eq.s32.totalorder %s77, 0
      %s80 = sadd.s32 %s79, 1
      %s81 = scalar_select %p78, %s79, %s80
      %p84 = pneg %p78
      %p85 = scmp.eq.s32.totalorder %s17, 1
      %p86 = por %p84, %p85
      %p87 = scmp.ne.s32.totalorder %s79, %s82
      %p88 = scmp.eq.s32.totalorder %s17, 0
      %p89 = por %p87, %p88
      %p90 = scmp.ne.s32.totalorder %s79, %s82
      %p91 = scmp.eq.s32.totalorder %s22, 1
      %p92 = por %p90, %p91
      %p93 = scmp.ne.s32.totalorder %s82, %s83
      %p94 = scmp.eq.s32.totalorder %s22, 0
      %p95 = por %p93, %p94
      %p96 = scmp.ne.s32.totalorder %s82, %s83
      %p97 = scmp.eq.s32.totalorder %s23, 1
      %p98 = por %p96, %p97
      %p100 = scmp.ne.s32.totalorder %s83, %s99
      %p101 = scmp.eq.s32.totalorder %s23, 0
      %p102 = por %p100, %p101
      %p103 = scmp.le.s32.totalorder 1, %s17
      %p104 = scmp.lt.s32.totalorder %s17, 3
      %p105 = pnand %p103, %p104
      %p106 = pneg %p105
      // Predicated region
      $region9: #{tpu_custom_call.1} parent=5 // pred_check
        _
      $region10: #{tpu_custom_call.1} parent=5 // pred_check_branch
        %108 = sbr.rel (%p105) target = $region12
      $region11: #{tpu_custom_call.1} parent=5 // pred_region
        %s109 = ssub.s32 %s17, 1
      $region12: #{tpu_custom_call.1} parent=5 // pred_fallthru
        _
      %p110 = scmp.lt.s32.totalorder %s17, 2
      // Predicated region
      $region13: #{tpu_custom_call.1} parent=5 // pred_check
        %p111 = pneg %p110
      $region14: #{tpu_custom_call.1} parent=5 // pred_check_branch
        %113 = sbr.rel (%p111) target = $region16
      $region15: #{tpu_custom_call.1} parent=5 // pred_region
        // Predicated region
        $region17: #{tpu_custom_call.1} parent=15 // pred_check
          %p114 = pneg %p37
        $region18: #{tpu_custom_call.1} parent=15 // pred_check_branch
          %116 = sbr.rel (%p114) target = $region20
        $region19: #{tpu_custom_call.1} parent=15 // pred_region
          %s117 = sand.u32 %s27, 1
          %s118 = scalar_lea.sflag [#allocation3], %s117
          %s119 = sand.u32 %s27, 1
          %s120 = smul.addr %s119, 96
          %s121 = scalar_lea.vmem [#allocation2], %s120
          %s123 = ssub.s32 1536, 1536
          %124 = vsyncadd %s118, %s123
          %s125 = smul.addr %s17, 24
          %s126 = smul.addr %s125, 64
          %s127 = scalar_lea.hbm %s0, %s126
          %s128 = sshll.u32 %s121, 4
          %s129 = int_to_ptr.vmem [resolvable:$true] %s128
          %134 = dma.hbm_to_vmem [thread:$0]  %s127, 1536, %s129, %s118, 192, 192, 12
        $region20: #{tpu_custom_call.1} parent=15 // pred_fallthru
          _
        // Predicated region
        $region21: #{tpu_custom_call.1} parent=15 // pred_check
          %p135 = pneg %p63
        $region22: #{tpu_custom_call.1} parent=15 // pred_check_branch
          %137 = sbr.rel (%p135) target = $region24
        $region23: #{tpu_custom_call.1} parent=15 // pred_region
          %s138 = sand.u32 %s53, 1
          %s139 = scalar_lea.sflag [#allocation6], %s138
          %s140 = sand.u32 %s53, 1
          %s141 = smul.addr %s140, 96
          %s142 = scalar_lea.vmem [#allocation5], %s141
          %s144 = ssub.s32 1536, 1536
          %145 = vsyncadd %s139, %s144
          %s146 = smul.addr %s17, 24
          %s147 = smul.addr %s146, 64
          %s148 = scalar_lea.hbm %s1, %s147
          %s149 = sshll.u32 %s142, 4
          %s150 = int_to_ptr.vmem [resolvable:$true] %s149
          %155 = dma.hbm_to_vmem [thread:$0]  %s148, 1536, %s150, %s139, 192, 192, 12
        $region24: #{tpu_custom_call.1} parent=15 // pred_fallthru
          _
      $region16: #{tpu_custom_call.1} parent=5 // pred_fallthru
        _
      %p156 = scmp.le.s32.totalorder 1, %s17
      %p157 = scmp.lt.s32.totalorder %s17, 3
      %p158 = pnand %p156, %p157
      %p159 = pneg %p158
      // Predicated region
      $region25: #{tpu_custom_call.1} parent=5 // pred_check
        _
      $region26: #{tpu_custom_call.1} parent=5 // pred_check_branch
        %161 = sbr.rel (%p158) target = $region28
      $region27: #{tpu_custom_call.1} parent=5 // pred_region
        %s162 = ssub.s32 %s17, 1
        %s163 = sand.u32 %s30, 1
        %s164 = scalar_lea.sflag [#allocation3], %s163
        %s165 = sand.u32 %s30, 1
        %s166 = smul.addr %s165, 96
        %s167 = scalar_lea.vmem [#allocation2], %s166
        // Predicated region
        $region29: #{tpu_custom_call.1} parent=27 // pred_check
          %p168 = pneg %p43
        $region30: #{tpu_custom_call.1} parent=27 // pred_check_branch
          %170 = sbr.rel (%p168) target = $region32
        $region31: #{tpu_custom_call.1} parent=27 // pred_region
          %171 = dma.done %s164, 1536
        $region32: #{tpu_custom_call.1} parent=27 // pred_fallthru
          _
        %s172 = sand.u32 %s56, 1
        %s173 = scalar_lea.sflag [#allocation6], %s172
        %s174 = sand.u32 %s56, 1
        %s175 = smul.addr %s174, 96
        %s176 = scalar_lea.vmem [#allocation5], %s175
        // Predicated region
        $region33: #{tpu_custom_call.1} parent=27 // pred_check
          %p177 = pneg %p69
        $region34: #{tpu_custom_call.1} parent=27 // pred_check_branch
          %179 = sbr.rel (%p177) target = $region36
        $region35: #{tpu_custom_call.1} parent=27 // pred_region
          %180 = dma.done %s173, 1536
        $region36: #{tpu_custom_call.1} parent=27 // pred_fallthru
          _
        %s181 = sand.u32 %s30, 1
        %s182 = scalar_lea.sflag [#allocation3], %s181
        %s183 = sand.u32 %s30, 1
        %s184 = smul.addr %s183, 96
        %s185 = scalar_lea.vmem [#allocation2], %s184
        %p186 = pneg %p43
        %p187 = pneg %p40
        %s188 = sand.u32 %s56, 1
        %s189 = scalar_lea.sflag [#allocation6], %s188
        %s190 = sand.u32 %s56, 1
        %s191 = smul.addr %s190, 96
        %s192 = scalar_lea.vmem [#allocation5], %s191
        %p193 = pneg %p69
        %p194 = pneg %p66
        %p195 = pneg %p95
        %p196 = pneg %p92
        %s197 = sand.u32 %s82, 1
        %s198 = scalar_lea.sflag [#allocation4], %s197
        %s199 = sand.u32 %s82, 1
        %s200 = smul.addr %s199, 64
        %s201 = scalar_lea.vmem [#allocation7], %s200
        %v203 = vld [vmem:[%s167] sm:$0xff]
        %v204 = vld [vmem:[%s167 + $0x8] sm:$0xf]
        %v205 = vld [vmem:[%s167 + $0xc] sm:$0xff]
        %v206 = vld [vmem:[%s167 + $0x14] sm:$0xf]
        %v207 = vld [vmem:[%s167 + $0x18] sm:$0xff]
        %v208 = vld [vmem:[%s167 + $0x20] sm:$0xf]
        %v209 = vld [vmem:[%s167 + $0x24] sm:$0xff]
        %v210 = vld [vmem:[%s167 + $0x2c] sm:$0xf]
        %v211 = vld [vmem:[%s167 + $0x30] sm:$0xff]
        %v212 = vld [vmem:[%s167 + $0x38] sm:$0xf]
        %v213 = vld [vmem:[%s167 + $0x3c] sm:$0xff]
        %v214 = vld [vmem:[%s167 + $0x44] sm:$0xf]
        %v215 = vld [vmem:[%s167 + $0x48] sm:$0xff]
        %v216 = vld [vmem:[%s167 + $0x50] sm:$0xf]
        %v217 = vld [vmem:[%s167 + $0x54] sm:$0xff]
        %v218 = vld [vmem:[%s167 + $0x5c] sm:$0xf]
        %v219 = vld [vmem:[%s176] sm:$0xff]
        %v220 = vld [vmem:[%s176 + $0x8] sm:$0xf]
        %v221 = vld [vmem:[%s176 + $0xc] sm:$0xff]
        %v222 = vld [vmem:[%s176 + $0x14] sm:$0xf]
        %v223 = vld [vmem:[%s176 + $0x18] sm:$0xff]
        %v224 = vld [vmem:[%s176 + $0x20] sm:$0xf]
        %v225 = vld [vmem:[%s176 + $0x24] sm:$0xff]
        %v226 = vld [vmem:[%s176 + $0x2c] sm:$0xf]
        %v227 = vld [vmem:[%s176 + $0x30] sm:$0xff]
        %v228 = vld [vmem:[%s176 + $0x38] sm:$0xf]
        %v229 = vld [vmem:[%s176 + $0x3c] sm:$0xff]
        %v230 = vld [vmem:[%s176 + $0x44] sm:$0xf]
        %v231 = vld [vmem:[%s176 + $0x48] sm:$0xff]
        %v232 = vld [vmem:[%s176 + $0x50] sm:$0xf]
        %v233 = vld [vmem:[%s176 + $0x54] sm:$0xff]
        %v234 = vld [vmem:[%s176 + $0x5c] sm:$0xf]
        %v251 = vunpack.c.l.b16 %v203
        %v252 = vunpack.c.h.b16 %v203
        %v253 = vunpack.c.l.b16 %v204
        %v254 = vunpack.c.l.b16 %v205
        %v255 = vunpack.c.h.b16 %v205
        %v256 = vunpack.c.l.b16 %v206
        %v257 = vunpack.c.l.b16 %v207
        %v258 = vunpack.c.h.b16 %v207
        %v259 = vunpack.c.l.b16 %v208
        %v260 = vunpack.c.l.b16 %v209
        %v261 = vunpack.c.h.b16 %v209
        %v262 = vunpack.c.l.b16 %v210
        %v263 = vunpack.c.l.b16 %v211
        %v264 = vunpack.c.h.b16 %v211
        %v265 = vunpack.c.l.b16 %v212
        %v266 = vunpack.c.l.b16 %v213
        %v267 = vunpack.c.h.b16 %v213
        %v268 = vunpack.c.l.b16 %v214
        %v269 = vunpack.c.l.b16 %v215
        %v270 = vunpack.c.h.b16 %v215
        %v271 = vunpack.c.l.b16 %v216
        %v272 = vunpack.c.l.b16 %v217
        %v273 = vunpack.c.h.b16 %v217
        %v274 = vunpack.c.l.b16 %v218
        %v275 = vpack.c.b16 %v254, %v251
        %v276 = vpack.c.b16 %v255, %v252
        %v277 = vpack.c.b16 %v256, %v253
        %v278 = vpack.c.b16 %v260, %v257
        %v279 = vpack.c.b16 %v261, %v258
        %v280 = vpack.c.b16 %v262, %v259
        %v281 = vpack.c.b16 %v266, %v263
        %v282 = vpack.c.b16 %v267, %v264
        %v283 = vpack.c.b16 %v268, %v265
        %v284 = vpack.c.b16 %v272, %v269
        %v285 = vpack.c.b16 %v273, %v270
        %v286 = vpack.c.b16 %v274, %v271
        %v311 = vunpack.c.l.b16 %v219
        %v312 = vunpack.c.h.b16 %v219
        %v313 = vunpack.c.l.b16 %v220
        %v314 = vunpack.c.l.b16 %v221
        %v315 = vunpack.c.h.b16 %v221
        %v316 = vunpack.c.l.b16 %v222
        %v317 = vunpack.c.l.b16 %v223
        %v318 = vunpack.c.h.b16 %v223
        %v319 = vunpack.c.l.b16 %v224
        %v320 = vunpack.c.l.b16 %v225
        %v321 = vunpack.c.h.b16 %v225
        %v322 = vunpack.c.l.b16 %v226
        %v323 = vunpack.c.l.b16 %v227
        %v324 = vunpack.c.h.b16 %v227
        %v325 = vunpack.c.l.b16 %v228
        %v326 = vunpack.c.l.b16 %v229
        %v327 = vunpack.c.h.b16 %v229
        %v328 = vunpack.c.l.b16 %v230
        %v329 = vunpack.c.l.b16 %v231
        %v330 = vunpack.c.h.b16 %v231
        %v331 = vunpack.c.l.b16 %v232
        %v332 = vunpack.c.l.b16 %v233
        %v333 = vunpack.c.h.b16 %v233
        %v334 = vunpack.c.l.b16 %v234
        %v335 = vpack.c.b16 %v314, %v311
        %v336 = vpack.c.b16 %v315, %v312
        %v337 = vpack.c.b16 %v316, %v313
        %v338 = vpack.c.b16 %v320, %v317
        %v339 = vpack.c.b16 %v321, %v318
        %v340 = vpack.c.b16 %v322, %v319
        %v341 = vpack.c.b16 %v326, %v323
        %v342 = vpack.c.b16 %v327, %v324
        %v343 = vpack.c.b16 %v328, %v325
        %v344 = vpack.c.b16 %v332, %v329
        %v345 = vpack.c.b16 %v333, %v330
        %v346 = vpack.c.b16 %v334, %v331
        %vm355 = vcmask 261120
        %v357 = vsel %vm355, %v277, 0
        %v360 = vsel %vm355, %v280, 0
        %v363 = vsel %vm355, %v283, 0
        %v366 = vsel %vm355, %v286, 0
        %v369 = vsel %vm355, %v337, 0
        %v372 = vsel %vm355, %v340, 0
        %v375 = vsel %vm355, %v343, 0
        %v378 = vsel %vm355, %v346, 0
        %380 = vmatprep.subr.bf16.mxu0 %v336
        %381 = vmatpush1.bf16.xpose.msra.mxu0 %v335
        %382 = vmatprep.subr.bf16.mxu0 %v339
        %383 = vmatpush1.bf16.xpose.msra.mxu0 %v338
        %384 = vmatprep.subr.bf16.mxu0 %v342
        %385 = vmatpush1.bf16.xpose.msra.mxu0 %v341
        %386 = vmatprep.subr.bf16.mxu0 %v345
        %387 = vmatpush1.bf16.xpose.msra.mxu0 %v344
        %388 = vmatprep.subr.bf16.mxu0 0
        %389 = vmatpush1.bf16.xpose.msra.mxu0 0
        %390 = vmatprep.subr.bf16.mxu0 0
        %391 = vmatpush1.bf16.xpose.msra.mxu0 0
        %392 = vmatprep.subr.bf16.mxu0 0
        %393 = vmatpush1.bf16.xpose.msra.mxu0 0
        %394 = vmatprep.subr.bf16.mxu0 0
        %395 = vmatpush1.bf16.xpose.msra.mxu0 0
        %396 = vmatprep.subr.bf16.mxu0 0
        %397 = vmatpush1.bf16.xpose.msra.mxu0 0
        %398 = vmatprep.subr.bf16.mxu0 0
        %399 = vmatpush1.bf16.xpose.msra.mxu0 0
        %400 = vmatprep.subr.bf16.mxu0 0
        %401 = vmatpush1.bf16.xpose.msra.mxu0 0
        %402 = vmatprep.subr.bf16.mxu0 0
        %403 = vmatpush1.bf16.xpose.msra.mxu0 0
        %404 = vmatprep.subr.bf16.mxu0 0
        %405 = vmatpush1.bf16.xpose.msra.mxu0 0
        %406 = vmatprep.subr.bf16.mxu0 0
        %407 = vmatpush1.bf16.xpose.msra.mxu0 0
        %408 = vmatprep.subr.bf16.mxu0 0
        %409 = vmatpush1.bf16.xpose.msra.mxu0 0
        %410 = vmatprep.subr.bf16.mxu0 0
        %411 = vmatpush1.bf16.xpose.msra.mxu0 0
        %412 = vmatprep.mubr.bf16.mxu0 %v276
        %413 = vmatmul.mubr.bf16.gmra.mrb[0].mxu0 %v275
        %v414 = vpop.f32.mrb[0].mxu0
        %v415 = vadd.f32 0.0, %v414
        %v416 = vpop.f32.mrb[0].mxu0
        %v417 = vpop.f32.mrb[0].mxu0
        %v418 = vadd.f32 0.0, %v417
        %v419 = vpop.f32.mrb[0].mxu0
        %420 = vmatprep.mubr.bf16.mxu0 %v279
        %421 = vmatmul.mubr.bf16.gmra.mrb[0].mxu0 %v278
        %v422 = vpop.f32.mrb[0].mxu0
        %v423 = vadd.f32 0.0, %v422
        %v424 = vpop.f32.mrb[0].mxu0
        %v425 = vpop.f32.mrb[0].mxu0
        %v426 = vadd.f32 0.0, %v425
        %v427 = vpop.f32.mrb[0].mxu0
        %428 = vmatprep.mubr.bf16.mxu0 %v282
        %429 = vmatmul.mubr.bf16.gmra.mrb[0].mxu0 %v281
        %v430 = vpop.f32.mrb[0].mxu0
        %v431 = vadd.f32 0.0, %v430
        %v432 = vpop.f32.mrb[0].mxu0
        %v433 = vpop.f32.mrb[0].mxu0
        %v434 = vadd.f32 0.0, %v433
        %v435 = vpop.f32.mrb[0].mxu0
        %436 = vmatprep.mubr.bf16.mxu0 %v285
        %437 = vmatmul.mubr.bf16.gmra.mrb[0].mxu0 %v284
        %v438 = vpop.f32.mrb[0].mxu0
        %v439 = vadd.f32 0.0, %v438
        %v440 = vpop.f32.mrb[0].mxu0
        %v441 = vpop.f32.mrb[0].mxu0
        %v442 = vadd.f32 0.0, %v441
        %v443 = vpop.f32.mrb[0].mxu0
        %444 = vdwg.mxu0
        %445 = vmatprep.subr.bf16.mxu0 0
        %446 = vmatpush1.bf16.xpose.msra.mxu0 %v369
        %447 = vmatprep.subr.bf16.mxu0 0
        %448 = vmatpush1.bf16.xpose.msra.mxu0 %v372
        %449 = vmatprep.subr.bf16.mxu0 0
        %450 = vmatpush1.bf16.xpose.msra.mxu0 %v375
        %451 = vmatprep.subr.bf16.mxu0 0
        %452 = vmatpush1.bf16.xpose.msra.mxu0 %v378
        %453 = vmatprep.subr.bf16.mxu0 0
        %454 = vmatpush1.bf16.xpose.msra.mxu0 0
        %455 = vmatprep.subr.bf16.mxu0 0
        %456 = vmatpush1.bf16.xpose.msra.mxu0 0
        %457 = vmatprep.subr.bf16.mxu0 0
        %458 = vmatpush1.bf16.xpose.msra.mxu0 0
        %459 = vmatprep.subr.bf16.mxu0 0
        %460 = vmatpush1.bf16.xpose.msra.mxu0 0
        %461 = vmatprep.subr.bf16.mxu0 0
        %462 = vmatpush1.bf16.xpose.msra.mxu0 0
        %463 = vmatprep.subr.bf16.mxu0 0
        %464 = vmatpush1.bf16.xpose.msra.mxu0 0
        %465 = vmatprep.subr.bf16.mxu0 0
        %466 = vmatpush1.bf16.xpose.msra.mxu0 0
        %467 = vmatprep.subr.bf16.mxu0 0
        %468 = vmatpush1.bf16.xpose.msra.mxu0 0
        %469 = vmatprep.subr.bf16.mxu0 0
        %470 = vmatpush1.bf16.xpose.msra.mxu0 0
        %471 = vmatprep.subr.bf16.mxu0 0
        %472 = vmatpush1.bf16.xpose.msra.mxu0 0
        %473 = vmatprep.subr.bf16.mxu0 0
        %474 = vmatpush1.bf16.xpose.msra.mxu0 0
        %475 = vmatprep.subr.bf16.mxu0 0
        %476 = vmatpush1.bf16.xpose.msra.mxu0 0
        %477 = vmatprep.mubr.bf16.mxu0 0
        %478 = vmatmul.mubr.bf16.gmra.mrb[0].mxu0 %v357
        %v479 = vpop.f32.mrb[0].mxu0
        %v480 = vadd.f32 %v415, %v479
        %v481 = vpop.f32.mrb[0].mxu0
        %v482 = vpop.f32.mrb[0].mxu0
        %v483 = vadd.f32 %v418, %v482
        %v484 = vpop.f32.mrb[0].mxu0
        %485 = vmatprep.mubr.bf16.mxu0 0
        %486 = vmatmul.mubr.bf16.gmra.mrb[0].mxu0 %v360
        %v487 = vpop.f32.mrb[0].mxu0
        %v488 = vadd.f32 %v423, %v487
        %v489 = vpop.f32.mrb[0].mxu0
        %v490 = vpop.f32.mrb[0].mxu0
        %v491 = vadd.f32 %v426, %v490
        %v492 = vpop.f32.mrb[0].mxu0
        %493 = vmatprep.mubr.bf16.mxu0 0
        %494 = vmatmul.mubr.bf16.gmra.mrb[0].mxu0 %v363
        %v495 = vpop.f32.mrb[0].mxu0
        %v496 = vadd.f32 %v431, %v495
        %v497 = vpop.f32.mrb[0].mxu0
        %v498 = vpop.f32.mrb[0].mxu0
        %v499 = vadd.f32 %v434, %v498
        %v500 = vpop.f32.mrb[0].mxu0
        %501 = vmatprep.mubr.bf16.mxu0 0
        %502 = vmatmul.mubr.bf16.gmra.mrb[0].mxu0 %v366
        %v503 = vpop.f32.mrb[0].mxu0
        %v504 = vadd.f32 %v439, %v503
        %v505 = vpop.f32.mrb[0].mxu0
        %v506 = vpop.f32.mrb[0].mxu0
        %v507 = vadd.f32 %v442, %v506
        %v508 = vpop.f32.mrb[0].mxu0
        %509 = vdwg.mxu0
        %v510 = vmul.f32 %v480, 0.3125
        %v511 = vmul.f32 %v483, 0.3125
        %v512 = vmul.f32 %v488, 0.3125
        %v513 = vmul.f32 %v491, 0.3125
        %v514 = vmul.f32 %v496, 0.3125
        %v515 = vmul.f32 %v499, 0.3125
        %v516 = vmul.f32 %v504, 0.3125
        %v517 = vmul.f32 %v507, 0.3125
        %vm518 = vcmask 130048
        %v519 = vsel %vm518, %v510, -inf
        %520 = vmax.xlane.f32.xlu0 %v519
        %v521 = vpop.xlane.xlu0 %520
        %v522 = vsel %vm518, %v511, -inf
        %523 = vmax.xlane.f32.xlu0 %v522
        %v524 = vpop.xlane.xlu0 %523
        %v525 = vsel %vm518, %v512, -inf
        %526 = vmax.xlane.f32.xlu0 %v525
        %v527 = vpop.xlane.xlu0 %526
        %v528 = vsel %vm518, %v513, -inf
        %529 = vmax.xlane.f32.xlu0 %v528
        %v530 = vpop.xlane.xlu0 %529
        %v531 = vsel %vm518, %v514, -inf
        %532 = vmax.xlane.f32.xlu0 %v531
        %v533 = vpop.xlane.xlu0 %532
        %v534 = vsel %vm518, %v515, -inf
        %535 = vmax.xlane.f32.xlu0 %v534
        %v536 = vpop.xlane.xlu0 %535
        %v537 = vsel %vm518, %v516, -inf
        %538 = vmax.xlane.f32.xlu0 %v537
        %v539 = vpop.xlane.xlu0 %538
        %v540 = vsel %vm518, %v517, -inf
        %541 = vmax.xlane.f32.xlu0 %v540
        %v542 = vpop.xlane.xlu0 %541
        %v543 = vsub.f32 %v510, %v521
        %v544 = vsub.f32 %v511, %v524
        %v545 = vsub.f32 %v512, %v527
        %v546 = vsub.f32 %v513, %v530
        %v547 = vsub.f32 %v514, %v533
        %v548 = vsub.f32 %v515, %v536
        %v549 = vsub.f32 %v516, %v539
        %v550 = vsub.f32 %v517, %v542
        %v551 = vmul.f32 %v543, 1.442695
        %v552 = vpow.pop %v551
        %v553 = vmul.f32 %v544, 1.442695
        %v554 = vpow.pop %v553
        %v555 = vmul.f32 %v545, 1.442695
        %v556 = vpow.pop %v555
        %v557 = vmul.f32 %v546, 1.442695
        %v558 = vpow.pop %v557
        %v559 = vmul.f32 %v547, 1.442695
        %v560 = vpow.pop %v559
        %v561 = vmul.f32 %v548, 1.442695
        %v562 = vpow.pop %v561
        %v563 = vmul.f32 %v549, 1.442695
        %v564 = vpow.pop %v563
        %v565 = vmul.f32 %v550, 1.442695
        %v566 = vpow.pop %v565
        %v567 = vsel %vm518, %v552, 0.0
        %568 = vadd.xlane.f32.xlu0 %v567
        %v569 = vpop.xlane.xlu0 %568
        %v570 = vsel %vm518, %v554, 0.0
        %571 = vadd.xlane.f32.xlu0 %v570
        %v572 = vpop.xlane.xlu0 %571
        %v573 = vsel %vm518, %v556, 0.0
        %574 = vadd.xlane.f32.xlu0 %v573
        %v575 = vpop.xlane.xlu0 %574
        %v576 = vsel %vm518, %v558, 0.0
        %577 = vadd.xlane.f32.xlu0 %v576
        %v578 = vpop.xlane.xlu0 %577
        %v579 = vsel %vm518, %v560, 0.0
        %580 = vadd.xlane.f32.xlu0 %v579
        %v581 = vpop.xlane.xlu0 %580
        %v582 = vsel %vm518, %v562, 0.0
        %583 = vadd.xlane.f32.xlu0 %v582
        %v584 = vpop.xlane.xlu0 %583
        %v585 = vsel %vm518, %v564, 0.0
        %586 = vadd.xlane.f32.xlu0 %v585
        %v587 = vpop.xlane.xlu0 %586
        %v588 = vsel %vm518, %v566, 0.0
        %589 = vadd.xlane.f32.xlu0 %v588
        %v590 = vpop.xlane.xlu0 %589
        %v591 = vrcp.pop %v569
        %v592 = vrcp.pop %v572
        %v593 = vrcp.pop %v575
        %v594 = vrcp.pop %v578
        %v595 = vrcp.pop %v581
        %v596 = vrcp.pop %v584
        %v597 = vrcp.pop %v587
        %v598 = vrcp.pop %v590
        %v599 = vmul.f32 %v552, %v591
        %v600 = vmul.f32 %v554, %v592
        %v601 = vmul.f32 %v556, %v593
        %v602 = vmul.f32 %v558, %v594
        %v603 = vmul.f32 %v560, %v595
        %v604 = vmul.f32 %v562, %v596
        %v605 = vmul.f32 %v564, %v597
        %v606 = vmul.f32 %v566, %v598
        %vm607 = vcmask 261248
        %v608 = vsel %vm607, %v510, -inf
        %609 = vmax.xlane.f32.xlu0 %v608
        %v610 = vpop.xlane.xlu0 %609
        %v611 = vsel %vm607, %v511, -inf
        %612 = vmax.xlane.f32.xlu0 %v611
        %v613 = vpop.xlane.xlu0 %612
        %v614 = vsel %vm607, %v512, -inf
        %615 = vmax.xlane.f32.xlu0 %v614
        %v616 = vpop.xlane.xlu0 %615
        %v617 = vsel %vm607, %v513, -inf
        %618 = vmax.xlane.f32.xlu0 %v617
        %v619 = vpop.xlane.xlu0 %618
        %v620 = vsel %vm607, %v514, -inf
        %621 = vmax.xlane.f32.xlu0 %v620
        %v622 = vpop.xlane.xlu0 %621
        %v623 = vsel %vm607, %v515, -inf
        %624 = vmax.xlane.f32.xlu0 %v623
        %v625 = vpop.xlane.xlu0 %624
        %v626 = vsel %vm607, %v516, -inf
        %627 = vmax.xlane.f32.xlu0 %v626
        %v628 = vpop.xlane.xlu0 %627
        %v629 = vsel %vm607, %v517, -inf
        %630 = vmax.xlane.f32.xlu0 %v629
        %v631 = vpop.xlane.xlu0 %630
        %v632 = vsub.f32 %v510, %v610
        %v633 = vsub.f32 %v511, %v613
        %v634 = vsub.f32 %v512, %v616
        %v635 = vsub.f32 %v513, %v619
        %v636 = vsub.f32 %v514, %v622
        %v637 = vsub.f32 %v515, %v625
        %v638 = vsub.f32 %v516, %v628
        %v639 = vsub.f32 %v517, %v631
        %v640 = vmul.f32 %v632, 1.442695
        %v641 = vpow.pop %v640
        %v642 = vmul.f32 %v633, 1.442695
        %v643 = vpow.pop %v642
        %v644 = vmul.f32 %v634, 1.442695
        %v645 = vpow.pop %v644
        %v646 = vmul.f32 %v635, 1.442695
        %v647 = vpow.pop %v646
        %v648 = vmul.f32 %v636, 1.442695
        %v649 = vpow.pop %v648
        %v650 = vmul.f32 %v637, 1.442695
        %v651 = vpow.pop %v650
        %v652 = vmul.f32 %v638, 1.442695
        %v653 = vpow.pop %v652
        %v654 = vmul.f32 %v639, 1.442695
        %v655 = vpow.pop %v654
        %664 = vrot.lane.b32.xlu0 %v641, 112
        %v665 = vpop.permute.xlu0 %664
        %666 = vrot.lane.b32.xlu0 %v643, 112
        %v667 = vpop.permute.xlu0 %666
        %668 = vrot.lane.b32.xlu0 %v645, 112
        %v669 = vpop.permute.xlu0 %668
        %670 = vrot.lane.b32.xlu0 %v647, 112
        %v671 = vpop.permute.xlu0 %670
        %672 = vrot.lane.b32.xlu0 %v649, 112
        %v673 = vpop.permute.xlu0 %672
        %674 = vrot.lane.b32.xlu0 %v651, 112
        %v675 = vpop.permute.xlu0 %674
        %676 = vrot.lane.b32.xlu0 %v653, 112
        %v677 = vpop.permute.xlu0 %676
        %678 = vrot.lane.b32.xlu0 %v655, 112
        %v679 = vpop.permute.xlu0 %678
        %v688 = vsel %vm518, %v665, 0.0
        %689 = vadd.xlane.f32.xlu0 %v688
        %v690 = vpop.xlane.xlu0 %689
        %v691 = vsel %vm518, %v667, 0.0
        %692 = vadd.xlane.f32.xlu0 %v691
        %v693 = vpop.xlane.xlu0 %692
        %v694 = vsel %vm518, %v669, 0.0
        %695 = vadd.xlane.f32.xlu0 %v694
        %v696 = vpop.xlane.xlu0 %695
        %v697 = vsel %vm518, %v671, 0.0
        %698 = vadd.xlane.f32.xlu0 %v697
        %v699 = vpop.xlane.xlu0 %698
        %v700 = vsel %vm518, %v673, 0.0
        %701 = vadd.xlane.f32.xlu0 %v700
        %v702 = vpop.xlane.xlu0 %701
        %v703 = vsel %vm518, %v675, 0.0
        %704 = vadd.xlane.f32.xlu0 %v703
        %v705 = vpop.xlane.xlu0 %704
        %v706 = vsel %vm518, %v677, 0.0
        %707 = vadd.xlane.f32.xlu0 %v706
        %v708 = vpop.xlane.xlu0 %707
        %v709 = vsel %vm518, %v679, 0.0
        %710 = vadd.xlane.f32.xlu0 %v709
        %v711 = vpop.xlane.xlu0 %710
        %v712 = vrcp.pop %v690
        %v713 = vrcp.pop %v693
        %v714 = vrcp.pop %v696
        %v715 = vrcp.pop %v699
        %v716 = vrcp.pop %v702
        %v717 = vrcp.pop %v705
        %v718 = vrcp.pop %v708
        %v719 = vrcp.pop %v711
        %v720 = vmul.f32 %v641, %v712
        %v721 = vmul.f32 %v643, %v713
        %v722 = vmul.f32 %v645, %v714
        %v723 = vmul.f32 %v647, %v715
        %v724 = vmul.f32 %v649, %v716
        %v725 = vmul.f32 %v651, %v717
        %v726 = vmul.f32 %v653, %v718
        %v727 = vmul.f32 %v655, %v719
        %vm728 = vcmask 392448
        %v729 = vsel %vm728, %v510, -inf
        %730 = vmax.xlane.f32.xlu0 %v729
        %v731 = vpop.xlane.xlu0 %730
        %v732 = vsel %vm728, %v511, -inf
        %733 = vmax.xlane.f32.xlu0 %v732
        %v734 = vpop.xlane.xlu0 %733
        %v735 = vsel %vm728, %v512, -inf
        %736 = vmax.xlane.f32.xlu0 %v735
        %v737 = vpop.xlane.xlu0 %736
        %v738 = vsel %vm728, %v513, -inf
        %739 = vmax.xlane.f32.xlu0 %v738
        %v740 = vpop.xlane.xlu0 %739
        %v741 = vsel %vm728, %v514, -inf
        %742 = vmax.xlane.f32.xlu0 %v741
        %v743 = vpop.xlane.xlu0 %742
        %v744 = vsel %vm728, %v515, -inf
        %745 = vmax.xlane.f32.xlu0 %v744
        %v746 = vpop.xlane.xlu0 %745
        %v747 = vsel %vm728, %v516, -inf
        %748 = vmax.xlane.f32.xlu0 %v747
        %v749 = vpop.xlane.xlu0 %748
        %v750 = vsel %vm728, %v517, -inf
        %751 = vmax.xlane.f32.xlu0 %v750
        %v752 = vpop.xlane.xlu0 %751
        %v753 = vsub.f32 %v510, %v731
        %v754 = vsub.f32 %v511, %v734
        %v755 = vsub.f32 %v512, %v737
        %v756 = vsub.f32 %v513, %v740
        %v757 = vsub.f32 %v514, %v743
        %v758 = vsub.f32 %v515, %v746
        %v759 = vsub.f32 %v516, %v749
        %v760 = vsub.f32 %v517, %v752
        %v761 = vmul.f32 %v753, 1.442695
        %v762 = vpow.pop %v761
        %v763 = vmul.f32 %v754, 1.442695
        %v764 = vpow.pop %v763
        %v765 = vmul.f32 %v755, 1.442695
        %v766 = vpow.pop %v765
        %v767 = vmul.f32 %v756, 1.442695
        %v768 = vpow.pop %v767
        %v769 = vmul.f32 %v757, 1.442695
        %v770 = vpow.pop %v769
        %v771 = vmul.f32 %v758, 1.442695
        %v772 = vpow.pop %v771
        %v773 = vmul.f32 %v759, 1.442695
        %v774 = vpow.pop %v773
        %v775 = vmul.f32 %v760, 1.442695
        %v776 = vpow.pop %v775
        %785 = vrot.lane.b32.xlu0 %v762, 96
        %v786 = vpop.permute.xlu0 %785
        %787 = vrot.lane.b32.xlu0 %v764, 96
        %v788 = vpop.permute.xlu0 %787
        %789 = vrot.lane.b32.xlu0 %v766, 96
        %v790 = vpop.permute.xlu0 %789
        %791 = vrot.lane.b32.xlu0 %v768, 96
        %v792 = vpop.permute.xlu0 %791
        %793 = vrot.lane.b32.xlu0 %v770, 96
        %v794 = vpop.permute.xlu0 %793
        %795 = vrot.lane.b32.xlu0 %v772, 96
        %v796 = vpop.permute.xlu0 %795
        %797 = vrot.lane.b32.xlu0 %v774, 96
        %v798 = vpop.permute.xlu0 %797
        %799 = vrot.lane.b32.xlu0 %v776, 96
        %v800 = vpop.permute.xlu0 %799
        %v809 = vsel %vm518, %v786, 0.0
        %810 = vadd.xlane.f32.xlu0 %v809
        %v811 = vpop.xlane.xlu0 %810
        %v812 = vsel %vm518, %v788, 0.0
        %813 = vadd.xlane.f32.xlu0 %v812
        %v814 = vpop.xlane.xlu0 %813
        %v815 = vsel %vm518, %v790, 0.0
        %816 = vadd.xlane.f32.xlu0 %v815
        %v817 = vpop.xlane.xlu0 %816
        %v818 = vsel %vm518, %v792, 0.0
        %819 = vadd.xlane.f32.xlu0 %v818
        %v820 = vpop.xlane.xlu0 %819
        %v821 = vsel %vm518, %v794, 0.0
        %822 = vadd.xlane.f32.xlu0 %v821
        %v823 = vpop.xlane.xlu0 %822
        %v824 = vsel %vm518, %v796, 0.0
        %825 = vadd.xlane.f32.xlu0 %v824
        %v826 = vpop.xlane.xlu0 %825
        %v827 = vsel %vm518, %v798, 0.0
        %828 = vadd.xlane.f32.xlu0 %v827
        %v829 = vpop.xlane.xlu0 %828
        %v830 = vsel %vm518, %v800, 0.0
        %831 = vadd.xlane.f32.xlu0 %v830
        %v832 = vpop.xlane.xlu0 %831
        %v833 = vrcp.pop %v811
        %v834 = vrcp.pop %v814
        %v835 = vrcp.pop %v817
        %v836 = vrcp.pop %v820
        %v837 = vrcp.pop %v823
        %v838 = vrcp.pop %v826
        %v839 = vrcp.pop %v829
        %v840 = vrcp.pop %v832
        %v841 = vmul.f32 %v762, %v833
        %v842 = vmul.f32 %v764, %v834
        %v843 = vmul.f32 %v766, %v835
        %v844 = vmul.f32 %v768, %v836
        %v845 = vmul.f32 %v770, %v837
        %v846 = vmul.f32 %v772, %v838
        %v847 = vmul.f32 %v774, %v839
        %v848 = vmul.f32 %v776, %v840
        %vm849 = vcmask 523648
        %v850 = vsel %vm849, %v510, -inf
        %851 = vmax.xlane.f32.xlu0 %v850
        %v852 = vpop.xlane.xlu0 %851
        %v853 = vsel %vm849, %v511, -inf
        %854 = vmax.xlane.f32.xlu0 %v853
        %v855 = vpop.xlane.xlu0 %854
        %v856 = vsel %vm849, %v512, -inf
        %857 = vmax.xlane.f32.xlu0 %v856
        %v858 = vpop.xlane.xlu0 %857
        %v859 = vsel %vm849, %v513, -inf
        %860 = vmax.xlane.f32.xlu0 %v859
        %v861 = vpop.xlane.xlu0 %860
        %v862 = vsel %vm849, %v514, -inf
        %863 = vmax.xlane.f32.xlu0 %v862
        %v864 = vpop.xlane.xlu0 %863
        %v865 = vsel %vm849, %v515, -inf
        %866 = vmax.xlane.f32.xlu0 %v865
        %v867 = vpop.xlane.xlu0 %866
        %v868 = vsel %vm849, %v516, -inf
        %869 = vmax.xlane.f32.xlu0 %v868
        %v870 = vpop.xlane.xlu0 %869
        %v871 = vsel %vm849, %v517, -inf
        %872 = vmax.xlane.f32.xlu0 %v871
        %v873 = vpop.xlane.xlu0 %872
        %v874 = vsub.f32 %v510, %v852
        %v875 = vsub.f32 %v511, %v855
        %v876 = vsub.f32 %v512, %v858
        %v877 = vsub.f32 %v513, %v861
        %v878 = vsub.f32 %v514, %v864
        %v879 = vsub.f32 %v515, %v867
        %v880 = vsub.f32 %v516, %v870
        %v881 = vsub.f32 %v517, %v873
        %v882 = vmul.f32 %v874, 1.442695
        %v883 = vpow.pop %v882
        %v884 = vmul.f32 %v875, 1.442695
        %v885 = vpow.pop %v884
        %v886 = vmul.f32 %v876, 1.442695
        %v887 = vpow.pop %v886
        %v888 = vmul.f32 %v877, 1.442695
        %v889 = vpow.pop %v888
        %v890 = vmul.f32 %v878, 1.442695
        %v891 = vpow.pop %v890
        %v892 = vmul.f32 %v879, 1.442695
        %v893 = vpow.pop %v892
        %v894 = vmul.f32 %v880, 1.442695
        %v895 = vpow.pop %v894
        %v896 = vmul.f32 %v881, 1.442695
        %v897 = vpow.pop %v896
        %906 = vrot.lane.b32.xlu0 %v883, 80
        %v907 = vpop.permute.xlu0 %906
        %908 = vrot.lane.b32.xlu0 %v885, 80
        %v909 = vpop.permute.xlu0 %908
        %910 = vrot.lane.b32.xlu0 %v887, 80
        %v911 = vpop.permute.xlu0 %910
        %912 = vrot.lane.b32.xlu0 %v889, 80
        %v913 = vpop.permute.xlu0 %912
        %914 = vrot.lane.b32.xlu0 %v891, 80
        %v915 = vpop.permute.xlu0 %914
        %916 = vrot.lane.b32.xlu0 %v893, 80
        %v917 = vpop.permute.xlu0 %916
        %918 = vrot.lane.b32.xlu0 %v895, 80
        %v919 = vpop.permute.xlu0 %918
        %920 = vrot.lane.b32.xlu0 %v897, 80
        %v921 = vpop.permute.xlu0 %920
        %v930 = vsel %vm518, %v907, 0.0
        %931 = vadd.xlane.f32.xlu0 %v930
        %v932 = vpop.xlane.xlu0 %931
        %v933 = vsel %vm518, %v909, 0.0
        %934 = vadd.xlane.f32.xlu0 %v933
        %v935 = vpop.xlane.xlu0 %934
        %v936 = vsel %vm518, %v911, 0.0
        %937 = vadd.xlane.f32.xlu0 %v936
        %v938 = vpop.xlane.xlu0 %937
        %v939 = vsel %vm518, %v913, 0.0
        %940 = vadd.xlane.f32.xlu0 %v939
        %v941 = vpop.xlane.xlu0 %940
        %v942 = vsel %vm518, %v915, 0.0
        %943 = vadd.xlane.f32.xlu0 %v942
        %v944 = vpop.xlane.xlu0 %943
        %v945 = vsel %vm518, %v917, 0.0
        %946 = vadd.xlane.f32.xlu0 %v945
        %v947 = vpop.xlane.xlu0 %946
        %v948 = vsel %vm518, %v919, 0.0
        %949 = vadd.xlane.f32.xlu0 %v948
        %v950 = vpop.xlane.xlu0 %949
        %v951 = vsel %vm518, %v921, 0.0
        %952 = vadd.xlane.f32.xlu0 %v951
        %v953 = vpop.xlane.xlu0 %952
        %v954 = vrcp.pop %v932
        %v955 = vrcp.pop %v935
        %v956 = vrcp.pop %v938
        %v957 = vrcp.pop %v941
        %v958 = vrcp.pop %v944
        %v959 = vrcp.pop %v947
        %v960 = vrcp.pop %v950
        %v961 = vrcp.pop %v953
        %v962 = vmul.f32 %v883, %v954
        %v963 = vmul.f32 %v885, %v955
        %v964 = vmul.f32 %v887, %v956
        %v965 = vmul.f32 %v889, %v957
        %v966 = vmul.f32 %v891, %v958
        %v967 = vmul.f32 %v893, %v959
        %v968 = vmul.f32 %v895, %v960
        %v969 = vmul.f32 %v897, %v961
        %v970 = vsel %vm518, %v599, %v720
        %v971 = vsel %vm518, %v600, %v721
        %v972 = vsel %vm518, %v601, %v722
        %v973 = vsel %vm518, %v602, %v723
        %v974 = vsel %vm518, %v603, %v724
        %v975 = vsel %vm518, %v604, %v725
        %v976 = vsel %vm518, %v605, %v726
        %v977 = vsel %vm518, %v606, %v727
        %v978 = vsel %vm355, %v970, %v841
        %v979 = vsel %vm355, %v971, %v842
        %v980 = vsel %vm355, %v972, %v843
        %v981 = vsel %vm355, %v973, %v844
        %v982 = vsel %vm355, %v974, %v845
        %v983 = vsel %vm355, %v975, %v846
        %v984 = vsel %vm355, %v976, %v847
        %v985 = vsel %vm355, %v977, %v848
        %vm986 = vcmask 392192
        %v987 = vsel %vm986, %v978, %v962
        %v988 = vsel %vm986, %v979, %v963
        %v989 = vsel %vm986, %v980, %v964
        %v990 = vsel %vm986, %v981, %v965
        %v991 = vsel %vm986, %v982, %v966
        %v992 = vsel %vm986, %v983, %v967
        %v993 = vsel %vm986, %v984, %v968
        %v994 = vsel %vm986, %v985, %v969
        %vm995 = vcmask 523264
        %996 = vst.msk [vmem:[%s201] sm:$0xff] %vm995, %v987
        %997 = vst.msk [vmem:[%s201 + $0x8] sm:$0xff] %vm995, %v988
        %998 = vst.msk [vmem:[%s201 + $0x10] sm:$0xff] %vm995, %v989
        %999 = vst.msk [vmem:[%s201 + $0x18] sm:$0xff] %vm995, %v990
        %1000 = vst.msk [vmem:[%s201 + $0x20] sm:$0xff] %vm995, %v991
        %1001 = vst.msk [vmem:[%s201 + $0x28] sm:$0xff] %vm995, %v992
        %1002 = vst.msk [vmem:[%s201 + $0x30] sm:$0xff] %vm995, %v993
        %1003 = vst.msk [vmem:[%s201 + $0x38] sm:$0xff] %vm995, %v994
        %s1004 = sand.u32 %s82, 1
        %s1005 = scalar_lea.sflag [#allocation4], %s1004
        %s1006 = sand.u32 %s82, 1
        %s1007 = smul.addr %s1006, 64
        %s1008 = scalar_lea.vmem [#allocation7], %s1007
        // Predicated region
        $region37: #{tpu_custom_call.1} parent=27 // pred_check
          %p1009 = pneg %p92
        $region38: #{tpu_custom_call.1} parent=27 // pred_check_branch
          %1011 = sbr.rel (%p1009) target = $region40
        $region39: #{tpu_custom_call.1} parent=27 // pred_region
          %s1013 = ssub.s32 1024, 1024
          %1014 = vsyncadd %s1005, %s1013
          %s1015 = smul.addr %s22, 8
          %s1016 = smul.addr %s1015, 128
          %s1017 = scalar_lea.hbm %s2, %s1016
          %s1018 = sshll.u32 %s1008, 4
          %s1019 = int_to_ptr.vmem [resolvable:$true] %s1018
          %1024 = dma.vmem_to_hbm [thread:$0]  %s1019, 1024, %s1017, %s1005, 128, 128, 8
        $region40: #{tpu_custom_call.1} parent=27 // pred_fallthru
          _
      $region28: #{tpu_custom_call.1} parent=5 // pred_fallthru
        _
      %p1025 = scmp.le.s32.totalorder 2, %s17
      // Predicated region
      $region41: #{tpu_custom_call.1} parent=5 // pred_check
        %p1026 = pneg %p1025
      $region42: #{tpu_custom_call.1} parent=5 // pred_check_branch
        %1028 = sbr.rel (%p1026) target = $region44
      $region43: #{tpu_custom_call.1} parent=5 // pred_region
        %s1029 = ssub.s32 %s17, 2
        // Predicated region
        $region45: #{tpu_custom_call.1} parent=43 // pred_check
          %p1030 = pneg %p98
        $region46: #{tpu_custom_call.1} parent=43 // pred_check_branch
          %1032 = sbr.rel (%p1030) target = $region48
        $region47: #{tpu_custom_call.1} parent=43 // pred_region
          %s1033 = sand.u32 %s83, 1
          %s1034 = scalar_lea.sflag [#allocation4], %s1033
          %s1035 = sand.u32 %s83, 1
          %s1036 = smul.addr %s1035, 64
          %s1037 = scalar_lea.vmem [#allocation7], %s1036
          %1038 = dma.done %s1034, 1024
        $region48: #{tpu_custom_call.1} parent=43 // pred_fallthru
          _
      $region44: #{tpu_custom_call.1} parent=5 // pred_fallthru
        _
    $region6: #{tpu_custom_call.1} parent=1 // loop_footer
      %s21 = sadd.s32 1, %s17
    $region7: #{tpu_custom_call.1} parent=1 // loop_footer_branch
      %16 = sbr.rel target = $region3
    $region8: #{tpu_custom_call.1} parent=1 // loop_exit
      _
    %1039 = vsyncpa [#allocation3], 1
    %s1040 = scalar_lea.sflag [#allocation3], 1
    %1041 = vsyncpa %s1040, 1
    %1042 = vsyncpa [#allocation6], 1
    %s1043 = scalar_lea.sflag [#allocation6], 1
    %1044 = vsyncpa %s1043, 1
    %1045 = vsyncpa [#allocation4], 1
    %s1046 = scalar_lea.sflag [#allocation4], 1
    %1047 = vsyncpa %s1046, 1

</llo_original>
